<compile_context>
chip_gen: v7x
topology: tpu7x:2x2x1
jax: 0.10.0
libtpu: 0.0.40
codegen_flags: <defaults>
</compile_context>

<pallas_src>
import functools

import jax
import jax.numpy as jnp
from jax.experimental import pallas as pl
from jax.experimental.pallas import tpu as pltpu

LANES = 128                     # TPU lane width; fused head is padded to this
COMPUTE_DTYPE = jnp.bfloat16    # MXU input dtype (accumulation is f32)


def _round_up(x, m):
    return (x + m - 1) // m * m


# ----------------------------------------------------------------------------
# Host-side parameter packing
# ----------------------------------------------------------------------------
def init_params(key, state_size, action_size, hidden=(64, 256)):
    """Deterministic synthetic parameters (PyTorch nn.Linear init, stored transposed:
    weights are (in_features, out_features), biases (1, out_features))."""
    h0, h1 = hidden
    ks = jax.random.split(key, 10)

    def lin(kw, kb, fan_in, fan_out):
        bound = 1.0 / jnp.sqrt(float(fan_in))
        w = jax.random.uniform(kw, (fan_in, fan_out), jnp.float32, -bound, bound)
        b = jax.random.uniform(kb, (1, fan_out), jnp.float32, -bound, bound)
        return w, b

    w1, b1 = lin(ks[0], ks[1], state_size, h0)   # fc1
    w2, b2 = lin(ks[2], ks[3], h0, h1)           # fc2  (value branch)
    w3, b3 = lin(ks[4], ks[5], h0, h1)           # fc3  (advantage branch)
    wv, bv = lin(ks[6], ks[7], h1, 1)            # value head
    wa, ba = lin(ks[8], ks[9], h1, action_size)  # advantage head
    return (w1, b1, w2, b2, w3, b3, wv, bv, wa, ba)


def pack_params(params, state_size, action_size, hidden=(64, 256)):
    """Pack the 10 tensors into 3 padded, bf16, MXU-ready buffers.

    p1: [w1 ; b1]                       shape (round16(S+1),   h0)
    p2: [w2|w3 ; b2|b3]                 shape (round16(h0+1),  2*h1)
    p3: block-diag(value, adv) head,    shape (round16(2h1+1), 128)
        lane-padded to 128: adv weights in cols [0, A), value in col A,
        bias row appended at row 2*h1.
    """
    (w1, b1, w2, b2, w3, b3, wv, bv, wa, ba) = params
    h0, h1 = hidden

    def pad_rows(a, rows):
        return jnp.zeros((rows, a.shape[1]), jnp.float32).at[: a.shape[0]].set(a)

    # p1: fc1 weight + bias row.
    p1 = jnp.concatenate([w1, b1], axis=0)                       # (S+1, h0)
    p1 = pad_rows(p1, _round_up(state_size + 1, 16)).astype(COMPUTE_DTYPE)

    # p2: fused fc2|fc3 weights + fused bias row.
    w23 = jnp.concatenate([w2, w3], axis=1)                      # (h0, 2*h1)
    b23 = jnp.concatenate([b2, b3], axis=1)                      # (1,  2*h1)
    p2 = jnp.concatenate([w23, b23], axis=0)                     # (h0+1, 2*h1)
    p2 = pad_rows(p2, _round_up(h0 + 1, 16)).astype(COMPUTE_DTYPE)

    # p3: fused, lane-padded block-diagonal head.
    wh = jnp.zeros((2 * h1, LANES), jnp.float32)
    wh = wh.at[:h1, action_size:action_size + 1].set(wv)         # value column = A
    wh = wh.at[h1:, :action_size].set(wa)                        # adv columns 0..A-1
    bh = jnp.zeros((1, LANES), jnp.float32)
    bh = bh.at[:, action_size:action_size + 1].set(bv)
    bh = bh.at[:, :action_size].set(ba)
    p3 = jnp.concatenate([wh, bh], axis=0)                       # (2*h1+1, 128)
    p3 = pad_rows(p3, _round_up(2 * h1 + 1, 16)).astype(COMPUTE_DTYPE)

    return p1, p2, p3


# ----------------------------------------------------------------------------
# Pallas kernel
# ----------------------------------------------------------------------------
def _ddqn_kernel(x_ref, p1_ref, p2_ref, p3_ref, q_ref, *,
                 state_size, h0, h1, action_size):
    f32 = jnp.float32
    x = x_ref[...]                                               # (B, S) bf16

    # fc1 + ReLU
    w1 = p1_ref[0:state_size, :]                                 # (S, h0) bf16
    b1 = p1_ref[state_size:state_size + 1, :].astype(f32)        # (1, h0) f32
    h = jnp.dot(x, w1, preferred_element_type=f32) + b1
    h = jnp.maximum(h, 0.0).astype(x.dtype)                      # (B, h0) bf16

    # Fused fc2|fc3 + ReLU: cols [0, h1) = value branch, [h1, 2h1) = adv branch.
    w23 = p2_ref[0:h0, :]                                        # (h0, 2*h1) bf16
    b23 = p2_ref[h0:h0 + 1, :].astype(f32)                       # (1, 2*h1) f32
    va = jnp.dot(h, w23, preferred_element_type=f32) + b23
    va = jnp.maximum(va, 0.0).astype(x.dtype)                    # (B, 2*h1) bf16

    # Fused block-diagonal value/adv heads (lane-padded to 128).
    wh = p3_ref[0:2 * h1, :]                                     # (2*h1, 128) bf16
    bh = p3_ref[2 * h1:2 * h1 + 1, :].astype(f32)                # (1, 128) f32
    head = jnp.dot(va, wh, preferred_element_type=f32) + bh      # (B, 128) f32
    # head[:, 0:A] = adv, head[:, A] = value, head[:, A+1:] = 0

    value = head[:, action_size:action_size + 1]                 # (B, 1)
    adv_avg = jnp.mean(head, axis=0, keepdims=True)              # (1, 128)

    # Dueling combine with the batch-dim mean, exactly as in the PyTorch code.
    # Columns >= action_size carry junk (sliced off outside the kernel);
    # writing all 128 lanes keeps the store unmasked / lane-dense.
    q_ref[...] = value + head - adv_avg


def ddqn_forward(state, packed, *, state_size, action_size, hidden=(64, 256)):
    h0, h1 = hidden
    p1, p2, p3 = packed
    batch = state.shape[0]

    kernel = functools.partial(
        _ddqn_kernel, state_size=state_size, h0=h0, h1=h1, action_size=action_size)
    vmem = pl.BlockSpec(memory_space=pltpu.MemorySpace.VMEM)

    q_pad = pl.pallas_call(
        kernel,
        out_shape=jax.ShapeDtypeStruct((batch, LANES), jnp.float32),
        in_specs=[vmem, vmem, vmem, vmem],
        out_specs=vmem,
    )(state.astype(COMPUTE_DTYPE), p1, p2, p3)

    # TODO(synk): for production batch sizes (>=256), add a batch grid with
    # dimension_semantics=("parallel",) so v7x's second TensorCore is used; the
    # batch-dim mean then needs a two-pass / wrapper-side reduction.
    return q_pad[:, :action_size]


# ----------------------------------------------------------------------------
# Pure-JAX references
# ----------------------------------------------------------------------------
def ddqn_reference_f32(state, params):
    """Full-f32 reference matching the PyTorch forward semantics exactly."""
    (w1, b1, w2, b2, w3, b3, wv, bv, wa, ba) = params
    y = jnp.maximum(state @ w1 + b1, 0.0)
    value = jnp.maximum(y @ w2 + b2, 0.0)
    adv = jnp.maximum(y @ w3 + b3, 0.0)
    value = value @ wv + bv
    adv = adv @ wa + ba
    adv_avg = jnp.mean(adv, axis=0, keepdims=True)
    return value + adv - adv_avg


def ddqn_reference_bf16(state, params):
    """Reference that mirrors the kernel's bf16-in / f32-accumulate numerics."""
    (w1, b1, w2, b2, w3, b3, wv, bv, wa, ba) = params
    bf = lambda a: a.astype(jnp.bfloat16)
    dot = lambda a, b: jnp.dot(bf(a), bf(b), preferred_element_type=jnp.float32)
    y = jnp.maximum(dot(state, w1) + bf(b1).astype(jnp.float32), 0.0)
    value = jnp.maximum(dot(y, w2) + bf(b2).astype(jnp.float32), 0.0)
    adv = jnp.maximum(dot(y, w3) + bf(b3).astype(jnp.float32), 0.0)
    value = dot(value, wv) + bf(bv).astype(jnp.float32)
    adv = dot(adv, wa) + bf(ba).astype(jnp.float32)
    adv_avg = jnp.mean(adv, axis=0, keepdims=True)
    return value + adv - adv_avg


if __name__ == "__main__":
    key = jax.random.PRNGKey(0)
    k_param, k_state = jax.random.split(key)

    batch = 8
    state_size = 16
    action_size = 4
    hidden = (64, 256)

    params = init_params(k_param, state_size, action_size, hidden)
    packed = pack_params(params, state_size, action_size, hidden)
    state = jax.random.normal(k_state, (batch, state_size), jnp.float32)

    fwd = jax.jit(functools.partial(
        ddqn_forward, state_size=state_size, action_size=action_size, hidden=hidden))
    q = jax.block_until_ready(fwd(state, packed))

    assert q.shape == (batch, action_size)

    q_bf = ddqn_reference_bf16(state, params)
    q_f32 = ddqn_reference_f32(state, params)
    assert jnp.allclose(q, q_bf, atol=1e-3, rtol=1e-3), "mismatch vs bf16-mirror reference"
    assert jnp.allclose(q, q_f32, atol=5e-2, rtol=5e-2), "mismatch vs f32 reference"

    print("KERNEL_OK")
</pallas_src>

<mosaic_0001>
module attributes {stable_mosaic.version = 11 : i64} {
  func.func @_ddqn_kernel(%arg0: memref<8x16xbf16, #tpu.memory_space<vmem>>, %arg1: memref<32x64xbf16, #tpu.memory_space<vmem>>, %arg2: memref<80x512xbf16, #tpu.memory_space<vmem>>, %arg3: memref<528x128xbf16, #tpu.memory_space<vmem>>, %arg4: memref<8x128xf32, #tpu.memory_space<vmem>>) attributes {dimension_semantics = [], scalar_prefetch = 0 : i64, scratch_operands = 0 : i64, tpu.core_type = #tpu.core_type<tc>} {
    %c0 = arith.constant 0 : index
    %c0_0 = arith.constant 0 : index
    %0 = vector.load %arg0[%c0, %c0_0] : memref<8x16xbf16, #tpu.memory_space<vmem>>, vector<8x16xbf16>
    %c0_1 = arith.constant 0 : index
    %c0_2 = arith.constant 0 : index
    %1 = vector.load %arg1[%c0_1, %c0_2] : memref<32x64xbf16, #tpu.memory_space<vmem>>, vector<16x64xbf16>
    %c16 = arith.constant 16 : index
    %c0_3 = arith.constant 0 : index
    %2 = vector.load %arg1[%c16, %c0_3] : memref<32x64xbf16, #tpu.memory_space<vmem>>, vector<1x64xbf16>
    %3 = arith.extf %2 : vector<1x64xbf16> to vector<1x64xf32>
    %cst = arith.constant dense<0.000000e+00> : vector<8x64xf32>
    %4 = tpu.matmul %0, %1, %cst {dimension_numbers = #tpu.dot_dimension_numbers<[1], [0], [0], [1], [0, 0, 1, 1], [], []>} : vector<8x16xbf16>, vector<16x64xbf16>, vector<8x64xf32> -> vector<8x64xf32>
    %5 = vector.broadcast %3 : vector<1x64xf32> to vector<8x64xf32>
    %6 = arith.addf %4, %5 : vector<8x64xf32>
    %cst_4 = arith.constant 0.000000e+00 : f32
    %7 = vector.broadcast %cst_4 : f32 to vector<8x64xf32>
    %8 = arith.maximumf %6, %7 : vector<8x64xf32>
    %9 = arith.truncf %8 : vector<8x64xf32> to vector<8x64xbf16>
    %c0_5 = arith.constant 0 : index
    %c0_6 = arith.constant 0 : index
    %10 = vector.load %arg2[%c0_5, %c0_6] : memref<80x512xbf16, #tpu.memory_space<vmem>>, vector<64x512xbf16>
    %c64 = arith.constant 64 : index
    %c0_7 = arith.constant 0 : index
    %11 = vector.load %arg2[%c64, %c0_7] : memref<80x512xbf16, #tpu.memory_space<vmem>>, vector<1x512xbf16>
    %12 = arith.extf %11 : vector<1x512xbf16> to vector<1x512xf32>
    %cst_8 = arith.constant dense<0.000000e+00> : vector<8x512xf32>
    %13 = tpu.matmul %9, %10, %cst_8 {dimension_numbers = #tpu.dot_dimension_numbers<[1], [0], [0], [1], [0, 0, 1, 1], [], []>} : vector<8x64xbf16>, vector<64x512xbf16>, vector<8x512xf32> -> vector<8x512xf32>
    %14 = vector.broadcast %12 : vector<1x512xf32> to vector<8x512xf32>
    %15 = arith.addf %13, %14 : vector<8x512xf32>
    %cst_9 = arith.constant 0.000000e+00 : f32
    %16 = vector.broadcast %cst_9 : f32 to vector<8x512xf32>
    %17 = arith.maximumf %15, %16 : vector<8x512xf32>
    %18 = arith.truncf %17 : vector<8x512xf32> to vector<8x512xbf16>
    %c0_10 = arith.constant 0 : index
    %c0_11 = arith.constant 0 : index
    %19 = vector.load %arg3[%c0_10, %c0_11] : memref<528x128xbf16, #tpu.memory_space<vmem>>, vector<512x128xbf16>
    %c512 = arith.constant 512 : index
    %c0_12 = arith.constant 0 : index
    %20 = vector.load %arg3[%c512, %c0_12] : memref<528x128xbf16, #tpu.memory_space<vmem>>, vector<1x128xbf16>
    %21 = arith.extf %20 : vector<1x128xbf16> to vector<1x128xf32>
    %cst_13 = arith.constant dense<0.000000e+00> : vector<8x128xf32>
    %22 = tpu.matmul %18, %19, %cst_13 {dimension_numbers = #tpu.dot_dimension_numbers<[1], [0], [0], [1], [0, 0, 1, 1], [], []>} : vector<8x512xbf16>, vector<512x128xbf16>, vector<8x128xf32> -> vector<8x128xf32>
    %23 = vector.broadcast %21 : vector<1x128xf32> to vector<8x128xf32>
    %24 = arith.addf %22, %23 : vector<8x128xf32>
    %25 = vector.extract_strided_slice %24 {offsets = [0, 4], sizes = [8, 1], strides = [1, 1]} : vector<8x128xf32> to vector<8x1xf32>
    %cst_14 = arith.constant dense<0.000000e+00> : vector<128xf32>
    %26 = vector.multi_reduction <add>, %24, %cst_14 [0] : vector<8x128xf32> to vector<128xf32>
    %27 = vector.shape_cast %26 : vector<128xf32> to vector<1x128xf32>
    %cst_15 = arith.constant 8.000000e+00 : f32
    %28 = vector.broadcast %cst_15 : f32 to vector<1x128xf32>
    %29 = arith.divf %27, %28 : vector<1x128xf32>
    %30 = vector.broadcast %25 : vector<8x1xf32> to vector<8x128xf32>
    %31 = arith.addf %30, %24 : vector<8x128xf32>
    %32 = vector.broadcast %29 : vector<1x128xf32> to vector<8x128xf32>
    %33 = arith.subf %31, %32 : vector<8x128xf32>
    %c0_16 = arith.constant 0 : index
    %c0_17 = arith.constant 0 : index
    %34 = vector.load %arg4[%c0_16, %c0_17] : memref<8x128xf32, #tpu.memory_space<vmem>>, vector<8x128xf32>
    tpu.vector_store %arg4[%c0_16, %c0_17], %33 {strides = array<i32>} : memref<8x128xf32, #tpu.memory_space<vmem>>, vector<8x128xf32>,
    return
  }
}

</mosaic_0001>

<llo_original>
// kernel: ddqn_forward.1
$region0: #{ddqn_forward.1}
  #allocation0 [shape = 'u32[]', space=smem, size = 0x4, offset = 0x4, fixed_abs, tag = 'smem constant byte address 0x4 - core index']
  #allocation1 [shape = 'u32[144,128]{1,0:T(1,128)}', space=vmem, size = 0x12000, scoped, tag = 'internal scratch']
  %s0 = inlined_call_operand.vmem [shape: bf16[8,16], index: 0, kind: input, shape index: {}]
  %s1 = inlined_call_operand.hbm [shape: bf16[32,64], index: 1, kind: input, shape index: {}]
  %s2 = inlined_call_operand.hbm [shape: bf16[80,512], index: 2, kind: input, shape index: {}]
  %s3 = inlined_call_operand.hbm [shape: bf16[528,128], index: 3, kind: input, shape index: {}]
  %s4 = inlined_call_operand.vmem [shape: f32[8,128], index: 4, kind: output, shape index: {}]
  %s5 = sld [smem:[#allocation0]]
  $region38: #{ddqn_forward.1} parent=0
    _
  %s7 = ssub.s32 1, %s5
  %s8 = scalar_select 0, %s7, %s5
  $region1: #{ddqn_forward.1} parent=0
    #allocation2 [shape = 'u8[8192]{0}', space=vmem, size = 0x2000, scoped, tag = 'input window, operand 1, single buffered']
    #allocation3 [shape = 's32[1]{0}', space=sflag, size = 0x4, scoped, tag = 'scoped memory for ddqn_forward.1']
    #allocation4 [shape = 'u8[81920]{0}', space=vmem, size = 0x14000, scoped, tag = 'input window, operand 2, single buffered']
    #allocation5 [shape = 's32[1]{0}', space=sflag, size = 0x4, scoped, tag = 'scoped memory for ddqn_forward.1']
    #allocation6 [shape = 'u8[135168]{0}', space=vmem, size = 0x21000, scoped, tag = 'input window, operand 3, single buffered']
    %9 = vsyncpa [#allocation3], 0
    %10 = vsyncpa [#allocation5], 0
    // Predicated region
    $region2: #{ddqn_forward.1} parent=1 // pred_check
      _
    $region3: #{ddqn_forward.1} parent=1 // pred_check_branch
      %12 = sbr.rel (0) target = $region5
    $region4: #{ddqn_forward.1} parent=1 // pred_region
      _
    $region5: #{ddqn_forward.1} parent=1 // pred_fallthru
      _
    // Predicated region
    $region6: #{ddqn_forward.1} parent=1 // pred_check
      _
    $region7: #{ddqn_forward.1} parent=1 // pred_check_branch
      %14 = sbr.rel (0) target = $region9
    $region8: #{ddqn_forward.1} parent=1 // pred_region
      %s16 = ssub.s32 256, 256
      %17 = vsyncadd [#allocation3], %s16
      %s18 = sshll.u32 [#allocation2], 4
      %s19 = int_to_ptr.vmem [resolvable:$true] %s18
      %24 = dma.hbm_to_vmem [thread:$0]  %s1, 256, %s19, [#allocation3], 64, 64, 4
    $region9: #{ddqn_forward.1} parent=1 // pred_fallthru
      _
    // Predicated region
    $region10: #{ddqn_forward.1} parent=1 // pred_check
      _
    $region11: #{ddqn_forward.1} parent=1 // pred_check_branch
      %26 = sbr.rel (0) target = $region13
    $region12: #{ddqn_forward.1} parent=1 // pred_region
      %s28 = ssub.s32 2560, 2560
      %29 = vsyncadd [#allocation5], %s28
      %s30 = sshll.u32 [#allocation4], 4
      %s31 = int_to_ptr.vmem [resolvable:$true] %s30
      %36 = dma.hbm_to_vmem [thread:$0]  %s2, 2560, %s31, [#allocation5], 256, 256, 16
    $region13: #{ddqn_forward.1} parent=1 // pred_fallthru
      _
    // Predicated region
    $region14: #{ddqn_forward.1} parent=1 // pred_check
      _
    $region15: #{ddqn_forward.1} parent=1 // pred_check_branch
      %38 = sbr.rel (0) target = $region17
    $region16: #{ddqn_forward.1} parent=1 // pred_region
      %s40 = ssub.s32 4224, 4224
      %41 = vsyncadd [#allocation5], %s40
      %s42 = sshll.u32 [#allocation6], 4
      %s43 = int_to_ptr.vmem [resolvable:$true] %s42
      %48 = dma.hbm_to_vmem [thread:$0]  %s3, 4224, %s43, [#allocation5], 64, 64, 4
    $region17: #{ddqn_forward.1} parent=1 // pred_fallthru
      _
    // Predicated region
    $region18: #{ddqn_forward.1} parent=1 // pred_check
      _
    $region19: #{ddqn_forward.1} parent=1 // pred_check_branch
      %50 = sbr.rel (0) target = $region21
    $region20: #{ddqn_forward.1} parent=1 // pred_region
      %51 = dma.done [#allocation3], 256
    $region21: #{ddqn_forward.1} parent=1 // pred_fallthru
      _
    // Predicated region
    $region22: #{ddqn_forward.1} parent=1 // pred_check
      _
    $region23: #{ddqn_forward.1} parent=1 // pred_check_branch
      %53 = sbr.rel (0) target = $region25
    $region24: #{ddqn_forward.1} parent=1 // pred_region
      %54 = dma.done [#allocation5], 2560
    $region25: #{ddqn_forward.1} parent=1 // pred_fallthru
      _
    // Predicated region
    $region26: #{ddqn_forward.1} parent=1 // pred_check
      _
    $region27: #{ddqn_forward.1} parent=1 // pred_check_branch
      %56 = sbr.rel (0) target = $region29
    $region28: #{ddqn_forward.1} parent=1 // pred_region
      %57 = dma.done [#allocation5], 4224
    $region29: #{ddqn_forward.1} parent=1 // pred_fallthru
      _
    %v59 = vld [vmem:[%s0] sm:$0xf]
    %v60 = vld [vmem:[#allocation2] sm:$0xf]
    %v61 = vld [vmem:[#allocation2 + $0x4] sm:$0xf]
    %v62 = vld [vmem:[#allocation2 + $0x8] sm:$0x1]
    %v63 = vunpack.c.l.bf16 %v62
    %v64 = vlaneseq
    %v65 = vshrl.u32 %v64, 7
    %v66 = vsub.s32 0, %v65
    %v67 = vrot.slane %v63, %v66
    %v70 = vunpack.c.l.b16 %v60
    %v71 = vunpack.c.l.b16 %v61
    %v72 = vpack.c.b16 %v71, %v70
    %vm74 = vcmask 130048
    %v76 = vsel %vm74, %v59, 0
    %78 = vmatprep.subr.bf16.mxu0 0
    %79 = vmatpush1.bf16.msra.mxu0 %v72
    %80 = vmatprep.subr.bf16.mxu0 0
    %81 = vmatpush1.bf16.msra.mxu0 0
    %82 = vmatprep.subr.bf16.mxu0 0
    %83 = vmatpush1.bf16.msra.mxu0 0
    %84 = vmatprep.subr.bf16.mxu0 0
    %85 = vmatpush1.bf16.msra.mxu0 0
    %86 = vmatprep.subr.bf16.mxu0 0
    %87 = vmatpush1.bf16.msra.mxu0 0
    %88 = vmatprep.subr.bf16.mxu0 0
    %89 = vmatpush1.bf16.msra.mxu0 0
    %90 = vmatprep.subr.bf16.mxu0 0
    %91 = vmatpush1.bf16.msra.mxu0 0
    %92 = vmatprep.subr.bf16.mxu0 0
    %93 = vmatpush1.bf16.msra.mxu0 0
    %94 = vmatprep.subr.bf16.mxu0 0
    %95 = vmatpush1.bf16.msra.mxu0 0
    %96 = vmatprep.subr.bf16.mxu0 0
    %97 = vmatpush1.bf16.msra.mxu0 0
    %98 = vmatprep.subr.bf16.mxu0 0
    %99 = vmatpush1.bf16.msra.mxu0 0
    %100 = vmatprep.subr.bf16.mxu0 0
    %101 = vmatpush1.bf16.msra.mxu0 0
    %102 = vmatprep.subr.bf16.mxu0 0
    %103 = vmatpush1.bf16.msra.mxu0 0
    %104 = vmatprep.subr.bf16.mxu0 0
    %105 = vmatpush1.bf16.msra.mxu0 0
    %106 = vmatprep.subr.bf16.mxu0 0
    %107 = vmatpush1.bf16.msra.mxu0 0
    %108 = vmatprep.subr.bf16.mxu0 0
    %109 = vmatpush1.bf16.msra.mxu0 0
    %110 = vmatprep.mubr.bf16.mxu0 0
    %111 = vmatmul.mubr.bf16.gmra.mrb[0].mxu0 %v76
    %v112 = vpop.f32.mrb[0].mxu0
    %v113 = vadd.f32 %v67, %v112
    %v114 = vpop.f32.mrb[0].mxu0
    %v115 = vpop.f32.mrb[0].mxu0
    %v116 = vpop.f32.mrb[0].mxu0
    %117 = vdwg.mxu0
    %v118 = vmax.f32 %v113, 0.0
    %v119 = vpack.c.bf16 %v118, %v118
    %v120 = vld [vmem:[#allocation4] sm:$0xff]
    %v121 = vld [vmem:[#allocation4 + $0x8] sm:$0xff]
    %v122 = vld [vmem:[#allocation4 + $0x10] sm:$0xff]
    %v123 = vld [vmem:[#allocation4 + $0x18] sm:$0xff]
    %v124 = vld [vmem:[#allocation4 + $0x20] sm:$0xff]
    %v125 = vld [vmem:[#allocation4 + $0x28] sm:$0xff]
    %v126 = vld [vmem:[#allocation4 + $0x30] sm:$0xff]
    %v127 = vld [vmem:[#allocation4 + $0x38] sm:$0xff]
    %v128 = vld [vmem:[#allocation4 + $0x40] sm:$0xff]
    %v129 = vld [vmem:[#allocation4 + $0x48] sm:$0xff]
    %v130 = vld [vmem:[#allocation4 + $0x50] sm:$0xff]
    %v131 = vld [vmem:[#allocation4 + $0x58] sm:$0xff]
    %v132 = vld [vmem:[#allocation4 + $0x60] sm:$0xff]
    %v133 = vld [vmem:[#allocation4 + $0x68] sm:$0xff]
    %v134 = vld [vmem:[#allocation4 + $0x70] sm:$0xff]
    %v135 = vld [vmem:[#allocation4 + $0x78] sm:$0xff]
    %v136 = vld [vmem:[#allocation4 + $0x80] sm:$0x11]
    %v137 = vld [vmem:[#allocation4 + $0x88] sm:$0x11]
    %v138 = vunpack.c.l.bf16 %v136
    %v139 = vunpack.c.h.bf16 %v136
    %v140 = vunpack.c.l.bf16 %v137
    %v141 = vunpack.c.h.bf16 %v137
    %v142 = vlaneseq
    %v143 = vshrl.u32 %v142, 7
    %v144 = vsub.s32 0, %v143
    %v145 = vrot.slane %v138, %v144
    %v146 = vlaneseq
    %v147 = vshrl.u32 %v146, 7
    %v148 = vsub.s32 0, %v147
    %v149 = vrot.slane %v139, %v148
    %v150 = vlaneseq
    %v151 = vshrl.u32 %v150, 7
    %v152 = vsub.s32 0, %v151
    %v153 = vrot.slane %v140, %v152
    %v154 = vlaneseq
    %v155 = vshrl.u32 %v154, 7
    %v156 = vsub.s32 0, %v155
    %v157 = vrot.slane %v141, %v156
    %v174 = vunpack.c.l.b16 %v120
    %v175 = vunpack.c.h.b16 %v120
    %v176 = vunpack.c.l.b16 %v121
    %v177 = vunpack.c.h.b16 %v121
    %v178 = vunpack.c.l.b16 %v122
    %v179 = vunpack.c.h.b16 %v122
    %v180 = vunpack.c.l.b16 %v123
    %v181 = vunpack.c.h.b16 %v123
    %v182 = vunpack.c.l.b16 %v124
    %v183 = vunpack.c.h.b16 %v124
    %v184 = vunpack.c.l.b16 %v125
    %v185 = vunpack.c.h.b16 %v125
    %v186 = vunpack.c.l.b16 %v126
    %v187 = vunpack.c.h.b16 %v126
    %v188 = vunpack.c.l.b16 %v127
    %v189 = vunpack.c.h.b16 %v127
    %v190 = vunpack.c.l.b16 %v128
    %v191 = vunpack.c.h.b16 %v128
    %v192 = vunpack.c.l.b16 %v129
    %v193 = vunpack.c.h.b16 %v129
    %v194 = vunpack.c.l.b16 %v130
    %v195 = vunpack.c.h.b16 %v130
    %v196 = vunpack.c.l.b16 %v131
    %v197 = vunpack.c.h.b16 %v131
    %v198 = vunpack.c.l.b16 %v132
    %v199 = vunpack.c.h.b16 %v132
    %v200 = vunpack.c.l.b16 %v133
    %v201 = vunpack.c.h.b16 %v133
    %v202 = vunpack.c.l.b16 %v134
    %v203 = vunpack.c.h.b16 %v134
    %v204 = vunpack.c.l.b16 %v135
    %v205 = vunpack.c.h.b16 %v135
    %v206 = vpack.c.b16 %v178, %v174
    %v207 = vpack.c.b16 %v179, %v175
    %v208 = vpack.c.b16 %v180, %v176
    %v209 = vpack.c.b16 %v181, %v177
    %v210 = vpack.c.b16 %v186, %v182
    %v211 = vpack.c.b16 %v187, %v183
    %v212 = vpack.c.b16 %v188, %v184
    %v213 = vpack.c.b16 %v189, %v185
    %v214 = vpack.c.b16 %v194, %v190
    %v215 = vpack.c.b16 %v195, %v191
    %v216 = vpack.c.b16 %v196, %v192
    %v217 = vpack.c.b16 %v197, %v193
    %v218 = vpack.c.b16 %v202, %v198
    %v219 = vpack.c.b16 %v203, %v199
    %v220 = vpack.c.b16 %v204, %v200
    %v221 = vpack.c.b16 %v205, %v201
    %vm238 = vcmask 523264
    %v240 = vsel %vm238, %v119, 0
    %242 = vmatprep.subr.bf16.mxu0 %v207
    %243 = vmatpush1.bf16.msra.mxu0 %v206
    %244 = vmatprep.subr.bf16.mxu0 %v211
    %245 = vmatpush1.bf16.msra.mxu0 %v210
    %246 = vmatprep.subr.bf16.mxu0 %v215
    %247 = vmatpush1.bf16.msra.mxu0 %v214
    %248 = vmatprep.subr.bf16.mxu0 %v219
    %249 = vmatpush1.bf16.msra.mxu0 %v218
    %250 = vmatprep.subr.bf16.mxu0 0
    %251 = vmatpush1.bf16.msra.mxu0 0
    %252 = vmatprep.subr.bf16.mxu0 0
    %253 = vmatpush1.bf16.msra.mxu0 0
    %254 = vmatprep.subr.bf16.mxu0 0
    %255 = vmatpush1.bf16.msra.mxu0 0
    %256 = vmatprep.subr.bf16.mxu0 0
    %257 = vmatpush1.bf16.msra.mxu0 0
    %258 = vmatprep.subr.bf16.mxu0 0
    %259 = vmatpush1.bf16.msra.mxu0 0
    %260 = vmatprep.subr.bf16.mxu0 0
    %261 = vmatpush1.bf16.msra.mxu0 0
    %262 = vmatprep.subr.bf16.mxu0 0
    %263 = vmatpush1.bf16.msra.mxu0 0
    %264 = vmatprep.subr.bf16.mxu0 0
    %265 = vmatpush1.bf16.msra.mxu0 0
    %266 = vmatprep.subr.bf16.mxu0 0
    %267 = vmatpush1.bf16.msra.mxu0 0
    %268 = vmatprep.subr.bf16.mxu0 0
    %269 = vmatpush1.bf16.msra.mxu0 0
    %270 = vmatprep.subr.bf16.mxu0 0
    %271 = vmatpush1.bf16.msra.mxu0 0
    %272 = vmatprep.subr.bf16.mxu0 0
    %273 = vmatpush1.bf16.msra.mxu0 0
    %274 = vmatprep.mubr.bf16.mxu0 0
    %275 = vmatmul.mubr.bf16.gmra.mrb[0].mxu0 %v240
    %v276 = vpop.f32.mrb[0].mxu0
    %v277 = vadd.f32 %v145, %v276
    %v278 = vpop.f32.mrb[0].mxu0
    %v279 = vadd.f32 %v149, %v278
    %v280 = vpop.f32.mrb[0].mxu0
    %v281 = vpop.f32.mrb[0].mxu0
    %282 = vdwg.mxu0
    %283 = vmatprep.subr.bf16.mxu0 %v209
    %284 = vmatpush1.bf16.msra.mxu0 %v208
    %285 = vmatprep.subr.bf16.mxu0 %v213
    %286 = vmatpush1.bf16.msra.mxu0 %v212
    %287 = vmatprep.subr.bf16.mxu0 %v217
    %288 = vmatpush1.bf16.msra.mxu0 %v216
    %289 = vmatprep.subr.bf16.mxu0 %v221
    %290 = vmatpush1.bf16.msra.mxu0 %v220
    %291 = vmatprep.subr.bf16.mxu0 0
    %292 = vmatpush1.bf16.msra.mxu0 0
    %293 = vmatprep.subr.bf16.mxu0 0
    %294 = vmatpush1.bf16.msra.mxu0 0
    %295 = vmatprep.subr.bf16.mxu0 0
    %296 = vmatpush1.bf16.msra.mxu0 0
    %297 = vmatprep.subr.bf16.mxu0 0
    %298 = vmatpush1.bf16.msra.mxu0 0
    %299 = vmatprep.subr.bf16.mxu0 0
    %300 = vmatpush1.bf16.msra.mxu0 0
    %301 = vmatprep.subr.bf16.mxu0 0
    %302 = vmatpush1.bf16.msra.mxu0 0
    %303 = vmatprep.subr.bf16.mxu0 0
    %304 = vmatpush1.bf16.msra.mxu0 0
    %305 = vmatprep.subr.bf16.mxu0 0
    %306 = vmatpush1.bf16.msra.mxu0 0
    %307 = vmatprep.subr.bf16.mxu0 0
    %308 = vmatpush1.bf16.msra.mxu0 0
    %309 = vmatprep.subr.bf16.mxu0 0
    %310 = vmatpush1.bf16.msra.mxu0 0
    %311 = vmatprep.subr.bf16.mxu0 0
    %312 = vmatpush1.bf16.msra.mxu0 0
    %313 = vmatprep.subr.bf16.mxu0 0
    %314 = vmatpush1.bf16.msra.mxu0 0
    %315 = vmatprep.mubr.bf16.mxu0 0
    %316 = vmatmul.mubr.bf16.gmra.mrb[0].mxu0 %v240
    %v317 = vpop.f32.mrb[0].mxu0
    %v318 = vadd.f32 %v153, %v317
    %v319 = vpop.f32.mrb[0].mxu0
    %v320 = vadd.f32 %v157, %v319
    %v321 = vpop.f32.mrb[0].mxu0
    %v322 = vpop.f32.mrb[0].mxu0
    %323 = vdwg.mxu0
    %v324 = vmax.f32 %v277, 0.0
    %v325 = vmax.f32 %v279, 0.0
    %v326 = vmax.f32 %v318, 0.0
    %v327 = vmax.f32 %v320, 0.0
    %v328 = vpack.c.bf16 %v324, %v324
    %v329 = vpack.c.bf16 %v325, %v325
    %v330 = vpack.c.bf16 %v326, %v326
    %v331 = vpack.c.bf16 %v327, %v327
    %v332 = vld [vmem:[#allocation6] sm:$0xf]
    %v333 = vld [vmem:[#allocation6 + $0x4] sm:$0xf]
    %v334 = vld [vmem:[#allocation6 + $0x8] sm:$0xf]
    %v335 = vld [vmem:[#allocation6 + $0xc] sm:$0xf]
    %v336 = vld [vmem:[#allocation6 + $0x10] sm:$0xf]
    %v337 = vld [vmem:[#allocation6 + $0x14] sm:$0xf]
    %v338 = vld [vmem:[#allocation6 + $0x18] sm:$0xf]
    %v339 = vld [vmem:[#allocation6 + $0x1c] sm:$0xf]
    %v340 = vld [vmem:[#allocation6 + $0x20] sm:$0xf]
    %v341 = vld [vmem:[#allocation6 + $0x24] sm:$0xf]
    %v342 = vld [vmem:[#allocation6 + $0x28] sm:$0xf]
    %v343 = vld [vmem:[#allocation6 + $0x2c] sm:$0xf]
    %v344 = vld [vmem:[#allocation6 + $0x30] sm:$0xf]
    %v345 = vld [vmem:[#allocation6 + $0x34] sm:$0xf]
    %v346 = vld [vmem:[#allocation6 + $0x38] sm:$0xf]
    %v347 = vld [vmem:[#allocation6 + $0x3c] sm:$0xf]
    %v348 = vld [vmem:[#allocation6 + $0x40] sm:$0xf]
    %v349 = vld [vmem:[#allocation6 + $0x44] sm:$0xf]
    %v350 = vld [vmem:[#allocation6 + $0x48] sm:$0xf]
    %v351 = vld [vmem:[#allocation6 + $0x4c] sm:$0xf]
    %v352 = vld [vmem:[#allocation6 + $0x50] sm:$0xf]
    %v353 = vld [vmem:[#allocation6 + $0x54] sm:$0xf]
    %v354 = vld [vmem:[#allocation6 + $0x58] sm:$0xf]
    %v355 = vld [vmem:[#allocation6 + $0x5c] sm:$0xf]
    %v356 = vld [vmem:[#allocation6 + $0x60] sm:$0xf]
    %v357 = vld [vmem:[#allocation6 + $0x64] sm:$0xf]
    %v358 = vld [vmem:[#allocation6 + $0x68] sm:$0xf]
    %v359 = vld [vmem:[#allocation6 + $0x6c] sm:$0xf]
    %v360 = vld [vmem:[#allocation6 + $0x70] sm:$0xf]
    %v361 = vld [vmem:[#allocation6 + $0x74] sm:$0xf]
    %v362 = vld [vmem:[#allocation6 + $0x78] sm:$0xf]
    %v363 = vld [vmem:[#allocation6 + $0x7c] sm:$0xf]
    %v364 = vld [vmem:[#allocation6 + $0x80] sm:$0xf]
    %v365 = vld [vmem:[#allocation6 + $0x84] sm:$0xf]
    %v366 = vld [vmem:[#allocation6 + $0x88] sm:$0xf]
    %v367 = vld [vmem:[#allocation6 + $0x8c] sm:$0xf]
    %v368 = vld [vmem:[#allocation6 + $0x90] sm:$0xf]
    %v369 = vld [vmem:[#allocation6 + $0x94] sm:$0xf]
    %v370 = vld [vmem:[#allocation6 + $0x98] sm:$0xf]
    %v371 = vld [vmem:[#allocation6 + $0x9c] sm:$0xf]
    %v372 = vld [vmem:[#allocation6 + $0xa0] sm:$0xf]
    %v373 = vld [vmem:[#allocation6 + $0xa4] sm:$0xf]
    %v374 = vld [vmem:[#allocation6 + $0xa8] sm:$0xf]
    %v375 = vld [vmem:[#allocation6 + $0xac] sm:$0xf]
    %v376 = vld [vmem:[#allocation6 + $0xb0] sm:$0xf]
    %v377 = vld [vmem:[#allocation6 + $0xb4] sm:$0xf]
    %v378 = vld [vmem:[#allocation6 + $0xb8] sm:$0xf]
    %v379 = vld [vmem:[#allocation6 + $0xbc] sm:$0xf]
    %v380 = vld [vmem:[#allocation6 + $0xc0] sm:$0xf]
    %v381 = vld [vmem:[#allocation6 + $0xc4] sm:$0xf]
    %v382 = vld [vmem:[#allocation6 + $0xc8] sm:$0xf]
    %v383 = vld [vmem:[#allocation6 + $0xcc] sm:$0xf]
    %v384 = vld [vmem:[#allocation6 + $0xd0] sm:$0xf]
    %v385 = vld [vmem:[#allocation6 + $0xd4] sm:$0xf]
    %v386 = vld [vmem:[#allocation6 + $0xd8] sm:$0xf]
    %v387 = vld [vmem:[#allocation6 + $0xdc] sm:$0xf]
    %v388 = vld [vmem:[#allocation6 + $0xe0] sm:$0xf]
    %v389 = vld [vmem:[#allocation6 + $0xe4] sm:$0xf]
    %v390 = vld [vmem:[#allocation6 + $0xe8] sm:$0xf]
    %v391 = vld [vmem:[#allocation6 + $0xec] sm:$0xf]
    %v392 = vld [vmem:[#allocation6 + $0xf0] sm:$0xf]
    %v393 = vld [vmem:[#allocation6 + $0xf4] sm:$0xf]
    %v394 = vld [vmem:[#allocation6 + $0xf8] sm:$0xf]
    %v395 = vld [vmem:[#allocation6 + $0xfc] sm:$0xf]
    %v396 = vld [vmem:[#allocation6 + $0x100] sm:$0x1]
    %v397 = vunpack.c.l.bf16 %v396
    %v398 = vlaneseq
    %v399 = vshrl.u32 %v398, 7
    %v400 = vsub.s32 0, %v399
    %v401 = vrot.slane %v397, %v400
    %v466 = vunpack.c.l.b16 %v332
    %v467 = vunpack.c.l.b16 %v333
    %v468 = vunpack.c.l.b16 %v334
    %v469 = vunpack.c.l.b16 %v335
    %v470 = vunpack.c.l.b16 %v336
    %v471 = vunpack.c.l.b16 %v337
    %v472 = vunpack.c.l.b16 %v338
    %v473 = vunpack.c.l.b16 %v339
    %v474 = vunpack.c.l.b16 %v340
    %v475 = vunpack.c.l.b16 %v341
    %v476 = vunpack.c.l.b16 %v342
    %v477 = vunpack.c.l.b16 %v343
    %v478 = vunpack.c.l.b16 %v344
    %v479 = vunpack.c.l.b16 %v345
    %v480 = vunpack.c.l.b16 %v346
    %v481 = vunpack.c.l.b16 %v347
    %v482 = vunpack.c.l.b16 %v348
    %v483 = vunpack.c.l.b16 %v349
    %v484 = vunpack.c.l.b16 %v350
    %v485 = vunpack.c.l.b16 %v351
    %v486 = vunpack.c.l.b16 %v352
    %v487 = vunpack.c.l.b16 %v353
    %v488 = vunpack.c.l.b16 %v354
    %v489 = vunpack.c.l.b16 %v355
    %v490 = vunpack.c.l.b16 %v356
    %v491 = vunpack.c.l.b16 %v357
    %v492 = vunpack.c.l.b16 %v358
    %v493 = vunpack.c.l.b16 %v359
    %v494 = vunpack.c.l.b16 %v360
    %v495 = vunpack.c.l.b16 %v361
    %v496 = vunpack.c.l.b16 %v362
    %v497 = vunpack.c.l.b16 %v363
    %v498 = vunpack.c.l.b16 %v364
    %v499 = vunpack.c.l.b16 %v365
    %v500 = vunpack.c.l.b16 %v366
    %v501 = vunpack.c.l.b16 %v367
    %v502 = vunpack.c.l.b16 %v368
    %v503 = vunpack.c.l.b16 %v369
    %v504 = vunpack.c.l.b16 %v370
    %v505 = vunpack.c.l.b16 %v371
    %v506 = vunpack.c.l.b16 %v372
    %v507 = vunpack.c.l.b16 %v373
    %v508 = vunpack.c.l.b16 %v374
    %v509 = vunpack.c.l.b16 %v375
    %v510 = vunpack.c.l.b16 %v376
    %v511 = vunpack.c.l.b16 %v377
    %v512 = vunpack.c.l.b16 %v378
    %v513 = vunpack.c.l.b16 %v379
    %v514 = vunpack.c.l.b16 %v380
    %v515 = vunpack.c.l.b16 %v381
    %v516 = vunpack.c.l.b16 %v382
    %v517 = vunpack.c.l.b16 %v383
    %v518 = vunpack.c.l.b16 %v384
    %v519 = vunpack.c.l.b16 %v385
    %v520 = vunpack.c.l.b16 %v386
    %v521 = vunpack.c.l.b16 %v387
    %v522 = vunpack.c.l.b16 %v388
    %v523 = vunpack.c.l.b16 %v389
    %v524 = vunpack.c.l.b16 %v390
    %v525 = vunpack.c.l.b16 %v391
    %v526 = vunpack.c.l.b16 %v392
    %v527 = vunpack.c.l.b16 %v393
    %v528 = vunpack.c.l.b16 %v394
    %v529 = vunpack.c.l.b16 %v395
    %v530 = vpack.c.b16 %v467, %v466
    %v531 = vpack.c.b16 %v469, %v468
    %v532 = vpack.c.b16 %v471, %v470
    %v533 = vpack.c.b16 %v473, %v472
    %v534 = vpack.c.b16 %v475, %v474
    %v535 = vpack.c.b16 %v477, %v476
    %v536 = vpack.c.b16 %v479, %v478
    %v537 = vpack.c.b16 %v481, %v480
    %v538 = vpack.c.b16 %v483, %v482
    %v539 = vpack.c.b16 %v485, %v484
    %v540 = vpack.c.b16 %v487, %v486
    %v541 = vpack.c.b16 %v489, %v488
    %v542 = vpack.c.b16 %v491, %v490
    %v543 = vpack.c.b16 %v493, %v492
    %v544 = vpack.c.b16 %v495, %v494
    %v545 = vpack.c.b16 %v497, %v496
    %v546 = vpack.c.b16 %v499, %v498
    %v547 = vpack.c.b16 %v501, %v500
    %v548 = vpack.c.b16 %v503, %v502
    %v549 = vpack.c.b16 %v505, %v504
    %v550 = vpack.c.b16 %v507, %v506
    %v551 = vpack.c.b16 %v509, %v508
    %v552 = vpack.c.b16 %v511, %v510
    %v553 = vpack.c.b16 %v513, %v512
    %v554 = vpack.c.b16 %v515, %v514
    %v555 = vpack.c.b16 %v517, %v516
    %v556 = vpack.c.b16 %v519, %v518
    %v557 = vpack.c.b16 %v521, %v520
    %v558 = vpack.c.b16 %v523, %v522
    %v559 = vpack.c.b16 %v525, %v524
    %v560 = vpack.c.b16 %v527, %v526
    %v561 = vpack.c.b16 %v529, %v528
    %594 = vmatprep.subr.bf16.mxu0 0
    %595 = vmatpush1.bf16.msra.mxu0 %v530
    %596 = vmatprep.subr.bf16.mxu0 0
    %597 = vmatpush1.bf16.msra.mxu0 %v531
    %598 = vmatprep.subr.bf16.mxu0 0
    %599 = vmatpush1.bf16.msra.mxu0 %v532
    %600 = vmatprep.subr.bf16.mxu0 0
    %601 = vmatpush1.bf16.msra.mxu0 %v533
    %602 = vmatprep.subr.bf16.mxu0 0
    %603 = vmatpush1.bf16.msra.mxu0 %v534
    %604 = vmatprep.subr.bf16.mxu0 0
    %605 = vmatpush1.bf16.msra.mxu0 %v535
    %606 = vmatprep.subr.bf16.mxu0 0
    %607 = vmatpush1.bf16.msra.mxu0 %v536
    %608 = vmatprep.subr.bf16.mxu0 0
    %609 = vmatpush1.bf16.msra.mxu0 %v537
    %610 = vmatprep.subr.bf16.mxu0 0
    %611 = vmatpush1.bf16.msra.mxu0 %v538
    %612 = vmatprep.subr.bf16.mxu0 0
    %613 = vmatpush1.bf16.msra.mxu0 %v539
    %614 = vmatprep.subr.bf16.mxu0 0
    %615 = vmatpush1.bf16.msra.mxu0 %v540
    %616 = vmatprep.subr.bf16.mxu0 0
    %617 = vmatpush1.bf16.msra.mxu0 %v541
    %618 = vmatprep.subr.bf16.mxu0 0
    %619 = vmatpush1.bf16.msra.mxu0 %v542
    %620 = vmatprep.subr.bf16.mxu0 0
    %621 = vmatpush1.bf16.msra.mxu0 %v543
    %622 = vmatprep.subr.bf16.mxu0 0
    %623 = vmatpush1.bf16.msra.mxu0 %v544
    %624 = vmatprep.subr.bf16.mxu0 0
    %625 = vmatpush1.bf16.msra.mxu0 %v545
    %626 = vmatprep.mubr.bf16.mxu0 %v329
    %627 = vmatmul.mubr.bf16.gmra.mrb[0].mxu0 %v328
    %v628 = vpop.f32.mrb[0].mxu0
    %v629 = vadd.f32 %v401, %v628
    %v630 = vpop.f32.mrb[0].mxu0
    %v631 = vpop.f32.mrb[0].mxu0
    %v632 = vpop.f32.mrb[0].mxu0
    %633 = vdwg.mxu0
    %634 = vmatprep.subr.bf16.mxu0 0
    %635 = vmatpush1.bf16.msra.mxu0 %v546
    %636 = vmatprep.subr.bf16.mxu0 0
    %637 = vmatpush1.bf16.msra.mxu0 %v547
    %638 = vmatprep.subr.bf16.mxu0 0
    %639 = vmatpush1.bf16.msra.mxu0 %v548
    %640 = vmatprep.subr.bf16.mxu0 0
    %641 = vmatpush1.bf16.msra.mxu0 %v549
    %642 = vmatprep.subr.bf16.mxu0 0
    %643 = vmatpush1.bf16.msra.mxu0 %v550
    %644 = vmatprep.subr.bf16.mxu0 0
    %645 = vmatpush1.bf16.msra.mxu0 %v551
    %646 = vmatprep.subr.bf16.mxu0 0
    %647 = vmatpush1.bf16.msra.mxu0 %v552
    %648 = vmatprep.subr.bf16.mxu0 0
    %649 = vmatpush1.bf16.msra.mxu0 %v553
    %650 = vmatprep.subr.bf16.mxu0 0
    %651 = vmatpush1.bf16.msra.mxu0 %v554
    %652 = vmatprep.subr.bf16.mxu0 0
    %653 = vmatpush1.bf16.msra.mxu0 %v555
    %654 = vmatprep.subr.bf16.mxu0 0
    %655 = vmatpush1.bf16.msra.mxu0 %v556
    %656 = vmatprep.subr.bf16.mxu0 0
    %657 = vmatpush1.bf16.msra.mxu0 %v557
    %658 = vmatprep.subr.bf16.mxu0 0
    %659 = vmatpush1.bf16.msra.mxu0 %v558
    %660 = vmatprep.subr.bf16.mxu0 0
    %661 = vmatpush1.bf16.msra.mxu0 %v559
    %662 = vmatprep.subr.bf16.mxu0 0
    %663 = vmatpush1.bf16.msra.mxu0 %v560
    %664 = vmatprep.subr.bf16.mxu0 0
    %665 = vmatpush1.bf16.msra.mxu0 %v561
    %666 = vmatprep.mubr.bf16.mxu0 %v331
    %667 = vmatmul.mubr.bf16.gmra.mrb[0].mxu0 %v330
    %v668 = vpop.f32.mrb[0].mxu0
    %v669 = vadd.f32 %v629, %v668
    %v670 = vpop.f32.mrb[0].mxu0
    %v671 = vpop.f32.mrb[0].mxu0
    %v672 = vpop.f32.mrb[0].mxu0
    %673 = vdwg.mxu0
    %v674 = vrot.slane %v669, 4
    %v675 = vadd.f32 %v669, %v674
    %v676 = vrot.slane %v675, 2
    %v677 = vadd.f32 %v675, %v676
    %v678 = vrot.slane %v677, 1
    %v679 = vadd.f32 %v677, %v678
    %v680 = vrcp.pop 8.0
    %v681 = vmul.f32 %v679, %v680
    %683 = vset.pattern.permute.xlu0 4
    %684 = vperm.xlu0 %683, %v669
    %v685 = vpop.permute.xlu0 %684
    %v687 = vadd.f32 %v685, %v669
    %v688 = vsub.f32 %v687, %v681
    %689 = vst [vmem:[%s4] sm:$0xff] %v688
    // Predicated region
    $region30: #{ddqn_forward.1} parent=1 // pred_check
      _
    $region31: #{ddqn_forward.1} parent=1 // pred_check_branch
      %691 = sbr.rel (0) target = $region33
    $region32: #{ddqn_forward.1} parent=1 // pred_region
      _
    $region33: #{ddqn_forward.1} parent=1 // pred_fallthru
      _
    // Predicated region
    $region34: #{ddqn_forward.1} parent=1 // pred_check
      _
    $region35: #{ddqn_forward.1} parent=1 // pred_check_branch
      %693 = sbr.rel (0) target = $region37
    $region36: #{ddqn_forward.1} parent=1 // pred_region
      _
    $region37: #{ddqn_forward.1} parent=1 // pred_fallthru
      _
    %694 = vsyncpa [#allocation3], 1
    %695 = vsyncpa [#allocation5], 1

</llo_original>
